<compile_context>
chip_gen: v7x
topology: tpu7x:2x2x1
jax: 0.10.0
libtpu: 0.0.40
codegen_flags: <defaults>
</compile_context>

<pallas_src>
import jax
import jax.numpy as jnp
from jax import lax
from jax.experimental import pallas as pl
from jax.experimental.pallas import tpu as pltpu


def _label_aware_kernel(proj_ref, hs_ref, sent_ref, hwc_ref, hws_ref, bias_ref,
                        out_ref):
    # proj_ref: (Npad, D)  projected (and zero-padded) label embeddings
    # hs_ref:   (Bt, L, D) hidden-states block
    # sent_ref: (Bt, D)    pooled sentence embeddings block
    # hwc_ref:  (1, D)     head weight, context half (row form)
    # hws_ref:  (1, D)     head weight, sentence half (row form)
    # bias_ref: (1, 1)     head bias, SMEM
    # out_ref:  (Bt, Npad) logits block (lane-dense)
    proj = proj_ref[...]
    hwc = hwc_ref[...]
    bias = bias_ref[0, 0]

    # Per-row sentence-embedding contribution (identical for every label): (Bt, 1)
    sent_term = lax.dot_general(
        sent_ref[...], hws_ref[...],
        dimension_numbers=(((1,), (1,)), ((), ())),
        preferred_element_type=jnp.float32)

    bt = hs_ref.shape[0]
    for i in range(bt):  # small static block, unrolled
        hs = hs_ref[i]                                              # (L, D)
        # scores[n, l] = proj[n, :] . hs[l, :]  (D contracted, no transpose)
        scores = lax.dot_general(
            proj, hs, dimension_numbers=(((1,), (1,)), ((), ())),
            preferred_element_type=jnp.float32)                     # (Npad, L)
        # f32 softmax over L (dropout on scores is identity at inference)
        scores = scores - jnp.max(scores, axis=-1, keepdims=True)
        e = jnp.exp(scores)
        weights = e / jnp.sum(e, axis=-1, keepdims=True)            # (Npad, L)
        ctx = jnp.dot(weights.astype(hs.dtype), hs,
                      preferred_element_type=jnp.float32)           # (Npad, D)
        # logits as a lane-dense row: (1, Npad)
        logit = lax.dot_general(
            hwc, ctx, dimension_numbers=(((1,), (1,)), ((), ())),
            preferred_element_type=jnp.float32)
        row = logit + sent_term[i:i + 1, :] + bias                  # (1, Npad)
        out_ref[i, :] = row[0].astype(out_ref.dtype)


def label_aware_head(label_embds, W, hidden_states, sentence_embd, head_w,
                     head_b, *, block_b=None):
    """label_embds (N,E), W (E,D), hidden_states (B,L,D), sentence_embd (B,D),
    head_w (2D,1), head_b (1,1)  ->  logits (B, N)."""
    N, E = label_embds.shape
    B, L, D = hidden_states.shape
    assert W.shape == (E, D) and head_w.shape == (2 * D, 1)

    # Hoist the grid-invariant label projection out of the kernel and pad the
    # label dim to a multiple of 128 (padded rows are sliced off afterwards).
    n_pad = pl.cdiv(N, 128) * 128
    proj = jnp.dot(label_embds, W, preferred_element_type=jnp.float32)
    proj = jnp.pad(proj, ((0, n_pad - N), (0, 0)))

    # Split the head weight so concat([ctx, sent]) never materializes.
    hw_ctx = head_w[:D, :].T    # (1, D)
    hw_sent = head_w[D:, :].T   # (1, D)

    if block_b is None:
        block_b = 8 if B % 8 == 0 else B
    assert B % block_b == 0

    out = pl.pallas_call(
        _label_aware_kernel,
        out_shape=jax.ShapeDtypeStruct((B, n_pad), jnp.float32),
        grid_spec=pltpu.PrefetchScalarGridSpec(
            num_scalar_prefetch=0,
            grid=(B // block_b,),
            in_specs=[
                pl.BlockSpec((n_pad, D), lambda b: (0, 0)),          # proj (resident)
                pl.BlockSpec((block_b, L, D), lambda b: (b, 0, 0)),  # hidden states
                pl.BlockSpec((block_b, D), lambda b: (b, 0)),        # sentence embds
                pl.BlockSpec((1, D), lambda b: (0, 0)),              # head W (ctx half)
                pl.BlockSpec((1, D), lambda b: (0, 0)),              # head W (sent half)
                pl.BlockSpec(memory_space=pltpu.MemorySpace.SMEM),   # head bias scalar
            ],
            out_specs=pl.BlockSpec((block_b, n_pad), lambda b: (b, 0)),
        ),
        compiler_params=pltpu.CompilerParams(
            dimension_semantics=("parallel",)),
    )(proj, hidden_states, sentence_embd, hw_ctx, hw_sent, head_b)
    return out[:, :N]


def _reference(label_embds, W, hidden_states, sentence_embd, head_w, head_b):
    scores = jnp.einsum("ne,ed,bld->bnl", label_embds, W, hidden_states)
    weights = jax.nn.softmax(scores, axis=-1)
    ctx = jnp.einsum("bnl,bld->bnd", weights, hidden_states)
    N = label_embds.shape[0]
    sent = jnp.tile(sentence_embd[:, None, :], (1, N, 1))
    feat = jnp.concatenate([ctx, sent], axis=-1)
    return (feat @ head_w + head_b[0, 0])[..., 0]


if __name__ == "__main__":
    # Small shapes consistent with the module (hidden size D == label-embd dim E).
    B, L, D, N = 2, 8, 32, 4
    E = D

    key = jax.random.PRNGKey(0)
    k1, k2, k3, k4, k5 = jax.random.split(key, 5)

    # Deterministic synthetic parameters (trunc-normal std=0.02 as in the module).
    label_embds = jax.random.normal(k1, (N, E), jnp.float32) * 0.02
    W = jax.random.truncated_normal(k2, -2.0, 2.0, (E, D), jnp.float32) * 0.02
    head_w = jax.random.truncated_normal(k3, -2.0, 2.0, (2 * D, 1), jnp.float32) * 0.02
    head_b = jnp.zeros((1, 1), jnp.float32)

    # Synthetic backbone outputs (see TODO above).
    hidden_states = jax.random.normal(k4, (B, L, D), jnp.float32)
    sentence_embd = jax.random.normal(k5, (B, D), jnp.float32)

    logits = label_aware_head(label_embds, W, hidden_states, sentence_embd,
                              head_w, head_b)
    logits = jax.block_until_ready(logits)

    ref = _reference(label_embds, W, hidden_states, sentence_embd, head_w, head_b)
    assert logits.shape == (B, N)
    assert jnp.allclose(logits, ref, atol=1e-4, rtol=1e-4)

    print("KERNEL_OK")
</pallas_src>

<mosaic_0001>
module attributes {stable_mosaic.version = 11 : i64} {
  func.func @_label_aware_kernel(%arg0: i32, %arg1: memref<128x32xf32, #tpu.memory_space<vmem>>, %arg2: memref<2x8x32xf32, #tpu.memory_space<vmem>>, %arg3: memref<2x32xf32, #tpu.memory_space<vmem>>, %arg4: memref<1x32xf32, #tpu.memory_space<vmem>>, %arg5: memref<1x32xf32, #tpu.memory_space<vmem>>, %arg6: memref<1x1xf32, #tpu.memory_space<smem>>, %arg7: memref<2x128xf32, #tpu.memory_space<vmem>>) attributes {dimension_semantics = [#tpu.dimension_semantics<parallel>], iteration_bounds = array<i64: 1>, scalar_prefetch = 0 : i64, scratch_operands = 0 : i64, tpu.core_type = #tpu.core_type<tc>, window_params = [{pipeline_mode = #tpu.pipeline_mode<synchronous>, transform_indices = @transform_0, window_bounds = array<i64: 128, 32>}, {transform_indices = @transform_1, window_bounds = array<i64: 2, 8, 32>}, {transform_indices = @transform_2, window_bounds = array<i64: 2, 32>}, {pipeline_mode = #tpu.pipeline_mode<synchronous>, transform_indices = @transform_3, window_bounds = array<i64: 1, 32>}, {pipeline_mode = #tpu.pipeline_mode<synchronous>, transform_indices = @transform_4, window_bounds = array<i64: 1, 32>}, {transform_indices = @transform_5, window_bounds = array<i64: 1, 1>}, {transform_indices = @transform_6, window_bounds = array<i64: 2, 128>}]} {
    %c0 = arith.constant 0 : index
    %c0_0 = arith.constant 0 : index
    %0 = vector.load %arg1[%c0, %c0_0] : memref<128x32xf32, #tpu.memory_space<vmem>>, vector<128x32xf32>
    %c0_1 = arith.constant 0 : index
    %c0_2 = arith.constant 0 : index
    %1 = vector.load %arg4[%c0_1, %c0_2] : memref<1x32xf32, #tpu.memory_space<vmem>>, vector<1x32xf32>
    %c0_3 = arith.constant 0 : index
    %c0_4 = arith.constant 0 : index
    %2 = memref.load %arg6[%c0_3, %c0_4] : memref<1x1xf32, #tpu.memory_space<smem>>
    %c0_5 = arith.constant 0 : index
    %c0_6 = arith.constant 0 : index
    %3 = vector.load %arg3[%c0_5, %c0_6] : memref<2x32xf32, #tpu.memory_space<vmem>>, vector<2x32xf32>
    %c0_7 = arith.constant 0 : index
    %c0_8 = arith.constant 0 : index
    %4 = vector.load %arg5[%c0_7, %c0_8] : memref<1x32xf32, #tpu.memory_space<vmem>>, vector<1x32xf32>
    %cst = arith.constant dense<0.000000e+00> : vector<2x1xf32>
    %5 = tpu.matmul %3, %4, %cst {dimension_numbers = #tpu.dot_dimension_numbers<[1], [1], [0], [0], [0, 0, 1, 0], [], []>} : vector<2x32xf32>, vector<1x32xf32>, vector<2x1xf32> -> vector<2x1xf32>
    %c0_9 = arith.constant 0 : index
    %c0_10 = arith.constant 0 : index
    %c0_11 = arith.constant 0 : index
    %6 = vector.load %arg2[%c0_9, %c0_10, %c0_11] : memref<2x8x32xf32, #tpu.memory_space<vmem>>, vector<1x8x32xf32>
    %7 = vector.shape_cast %6 : vector<1x8x32xf32> to vector<8x32xf32>
    %cst_12 = arith.constant dense<0.000000e+00> : vector<128x8xf32>
    %8 = tpu.matmul %0, %7, %cst_12 {dimension_numbers = #tpu.dot_dimension_numbers<[1], [1], [0], [0], [0, 0, 1, 0], [], []>} : vector<128x32xf32>, vector<8x32xf32>, vector<128x8xf32> -> vector<128x8xf32>
    %cst_13 = arith.constant dense<0xFF800000> : vector<128xf32>
    %9 = vector.multi_reduction <maximumf>, %8, %cst_13 [1] : vector<128x8xf32> to vector<128xf32>
    %10 = vector.shape_cast %9 : vector<128xf32> to vector<128x1xf32>
    %11 = vector.broadcast %10 : vector<128x1xf32> to vector<128x8xf32>
    %12 = arith.subf %8, %11 : vector<128x8xf32>
    %13 = math.exp %12 : vector<128x8xf32>
    %cst_14 = arith.constant dense<0.000000e+00> : vector<128xf32>
    %14 = vector.multi_reduction <add>, %13, %cst_14 [1] : vector<128x8xf32> to vector<128xf32>
    %15 = vector.shape_cast %14 : vector<128xf32> to vector<128x1xf32>
    %16 = vector.broadcast %15 : vector<128x1xf32> to vector<128x8xf32>
    %17 = arith.divf %13, %16 : vector<128x8xf32>
    %cst_15 = arith.constant dense<0.000000e+00> : vector<128x32xf32>
    %18 = tpu.matmul %17, %7, %cst_15 {dimension_numbers = #tpu.dot_dimension_numbers<[1], [0], [0], [1], [0, 0, 1, 1], [], []>} : vector<128x8xf32>, vector<8x32xf32>, vector<128x32xf32> -> vector<128x32xf32>
    %cst_16 = arith.constant dense<0.000000e+00> : vector<1x128xf32>
    %19 = tpu.matmul %1, %18, %cst_16 {dimension_numbers = #tpu.dot_dimension_numbers<[1], [1], [0], [0], [0, 0, 1, 0], [], []>} : vector<1x32xf32>, vector<128x32xf32>, vector<1x128xf32> -> vector<1x128xf32>
    %20 = vector.extract_strided_slice %5 {offsets = [0, 0], sizes = [1, 1], strides = [1, 1]} : vector<2x1xf32> to vector<1x1xf32>
    %21 = vector.broadcast %20 : vector<1x1xf32> to vector<1x128xf32>
    %22 = arith.addf %19, %21 : vector<1x128xf32>
    %23 = vector.broadcast %2 : f32 to vector<1x128xf32>
    %24 = arith.addf %22, %23 : vector<1x128xf32>
    %25 = vector.shape_cast %24 : vector<1x128xf32> to vector<128xf32>
    %c0_17 = arith.constant 0 : index
    %c0_18 = arith.constant 0 : index
    %26 = vector.load %arg7[%c0_17, %c0_18] : memref<2x128xf32, #tpu.memory_space<vmem>>, vector<1x128xf32>
    %27 = vector.shape_cast %26 : vector<1x128xf32> to vector<128xf32>
    %28 = vector.shape_cast %25 : vector<128xf32> to vector<1x128xf32>
    tpu.vector_store %arg7[%c0_17, %c0_18], %28 {strides = array<i32>} : memref<2x128xf32, #tpu.memory_space<vmem>>, vector<1x128xf32>,
    %c1 = arith.constant 1 : index
    %c0_19 = arith.constant 0 : index
    %c0_20 = arith.constant 0 : index
    %29 = vector.load %arg2[%c1, %c0_19, %c0_20] : memref<2x8x32xf32, #tpu.memory_space<vmem>>, vector<1x8x32xf32>
    %30 = vector.shape_cast %29 : vector<1x8x32xf32> to vector<8x32xf32>
    %cst_21 = arith.constant dense<0.000000e+00> : vector<128x8xf32>
    %31 = tpu.matmul %0, %30, %cst_21 {dimension_numbers = #tpu.dot_dimension_numbers<[1], [1], [0], [0], [0, 0, 1, 0], [], []>} : vector<128x32xf32>, vector<8x32xf32>, vector<128x8xf32> -> vector<128x8xf32>
    %cst_22 = arith.constant dense<0xFF800000> : vector<128xf32>
    %32 = vector.multi_reduction <maximumf>, %31, %cst_22 [1] : vector<128x8xf32> to vector<128xf32>
    %33 = vector.shape_cast %32 : vector<128xf32> to vector<128x1xf32>
    %34 = vector.broadcast %33 : vector<128x1xf32> to vector<128x8xf32>
    %35 = arith.subf %31, %34 : vector<128x8xf32>
    %36 = math.exp %35 : vector<128x8xf32>
    %cst_23 = arith.constant dense<0.000000e+00> : vector<128xf32>
    %37 = vector.multi_reduction <add>, %36, %cst_23 [1] : vector<128x8xf32> to vector<128xf32>
    %38 = vector.shape_cast %37 : vector<128xf32> to vector<128x1xf32>
    %39 = vector.broadcast %38 : vector<128x1xf32> to vector<128x8xf32>
    %40 = arith.divf %36, %39 : vector<128x8xf32>
    %cst_24 = arith.constant dense<0.000000e+00> : vector<128x32xf32>
    %41 = tpu.matmul %40, %30, %cst_24 {dimension_numbers = #tpu.dot_dimension_numbers<[1], [0], [0], [1], [0, 0, 1, 1], [], []>} : vector<128x8xf32>, vector<8x32xf32>, vector<128x32xf32> -> vector<128x32xf32>
    %cst_25 = arith.constant dense<0.000000e+00> : vector<1x128xf32>
    %42 = tpu.matmul %1, %41, %cst_25 {dimension_numbers = #tpu.dot_dimension_numbers<[1], [1], [0], [0], [0, 0, 1, 0], [], []>} : vector<1x32xf32>, vector<128x32xf32>, vector<1x128xf32> -> vector<1x128xf32>
    %43 = vector.extract_strided_slice %5 {offsets = [1, 0], sizes = [1, 1], strides = [1, 1]} : vector<2x1xf32> to vector<1x1xf32>
    %44 = vector.broadcast %43 : vector<1x1xf32> to vector<1x128xf32>
    %45 = arith.addf %42, %44 : vector<1x128xf32>
    %46 = vector.broadcast %2 : f32 to vector<1x128xf32>
    %47 = arith.addf %45, %46 : vector<1x128xf32>
    %48 = vector.shape_cast %47 : vector<1x128xf32> to vector<128xf32>
    %c1_26 = arith.constant 1 : index
    %c0_27 = arith.constant 0 : index
    %49 = vector.load %arg7[%c1_26, %c0_27] : memref<2x128xf32, #tpu.memory_space<vmem>>, vector<1x128xf32>
    %50 = vector.shape_cast %49 : vector<1x128xf32> to vector<128xf32>
    %51 = vector.shape_cast %48 : vector<128xf32> to vector<1x128xf32>
    tpu.vector_store %arg7[%c1_26, %c0_27], %51 {strides = array<i32>} : memref<2x128xf32, #tpu.memory_space<vmem>>, vector<1x128xf32>,
    return
  }
  func.func @transform_0(%arg0: i32) -> (i32, i32) {
    %c0_i32 = arith.constant 0 : i32
    %c0_i32_0 = arith.constant 0 : i32
    %c0_i32_1 = arith.constant 0 : i32
    return %c0_i32, %c0_i32_0 : i32, i32
  }
  func.func @transform_1(%arg0: i32) -> (i32, i32, i32) {
    %c0_i32 = arith.constant 0 : i32
    %c0_i32_0 = arith.constant 0 : i32
    %c0_i32_1 = arith.constant 0 : i32
    return %arg0, %c0_i32, %c0_i32_0 : i32, i32, i32
  }
  func.func @transform_2(%arg0: i32) -> (i32, i32) {
    %c0_i32 = arith.constant 0 : i32
    %c0_i32_0 = arith.constant 0 : i32
    return %arg0, %c0_i32 : i32, i32
  }
  func.func @transform_3(%arg0: i32) -> (i32, i32) {
    %c0_i32 = arith.constant 0 : i32
    %c0_i32_0 = arith.constant 0 : i32
    %c0_i32_1 = arith.constant 0 : i32
    return %c0_i32, %c0_i32_0 : i32, i32
  }
  func.func @transform_4(%arg0: i32) -> (i32, i32) {
    %c0_i32 = arith.constant 0 : i32
    %c0_i32_0 = arith.constant 0 : i32
    %c0_i32_1 = arith.constant 0 : i32
    return %c0_i32, %c0_i32_0 : i32, i32
  }
  func.func @transform_5(%arg0: i32) -> (i32, i32) {
    %c0_i32 = arith.constant 0 : i32
    %c0_i32_0 = arith.constant 0 : i32
    %c0_i32_1 = arith.constant 0 : i32
    return %c0_i32, %c0_i32_0 : i32, i32
  }
  func.func @transform_6(%arg0: i32) -> (i32, i32) {
    %c0_i32 = arith.constant 0 : i32
    %c0_i32_0 = arith.constant 0 : i32
    return %arg0, %c0_i32 : i32, i32
  }
}

</mosaic_0001>

<llo_original>
// kernel: tpu_custom_call.1
$region0: #{tpu_custom_call.1}
  #allocation0 [shape = 'u32[]', space=smem, size = 0x4, offset = 0x4, fixed_abs, tag = 'smem constant byte address 0x4 - core index']
  #allocation1 [shape = 'u32[144,128]{1,0:T(1,128)}', space=vmem, size = 0x12000, scoped, tag = 'internal scratch']
  #allocation2 [shape = 'f32[1,1]{1,0:T(1,128)S(6)}', space=smem, size = 0x200, scoped, tag = 'scoped memory for tpu_custom_call.1']
  %s0 = inlined_call_operand.vmem [shape: f32[128,32], index: 0, kind: input, shape index: {}]
  %s1 = inlined_call_operand.vmem [shape: f32[2,8,32], index: 1, kind: input, shape index: {}]
  %s2 = inlined_call_operand.vmem [shape: f32[2,32], index: 2, kind: input, shape index: {}]
  %s3 = inlined_call_operand.vmem [shape: f32[1,32], index: 3, kind: input, shape index: {}]
  %s4 = inlined_call_operand.vmem [shape: f32[1,32], index: 4, kind: input, shape index: {}]
  %s5 = inlined_call_operand.<no memory space> [shape: f32[1,1], index: 5, kind: input, shape index: {}]
  %s6 = inlined_call_operand.hbm [shape: f32[2,128], index: 6, kind: output, shape index: {}]
  %s7 = sld [smem:[#allocation0]]
  $region34: #{tpu_custom_call.1} parent=0
    _
  %s9 = ssub.s32 1, %s7
  %s10 = scalar_select 0, %s9, %s7
  %11 = sst [smem:[#allocation2]] %s5
  $region1: #{tpu_custom_call.1} parent=0
    #allocation3 [shape = 'u8[1024]{0}', space=vmem, size = 0x400, scoped, tag = 'output window, operand 0, single buffered']
    #allocation4 [shape = 's32[1]{0}', space=sflag, size = 0x4, scoped, tag = 'scoped memory for tpu_custom_call.1']
    %12 = vsyncpa [#allocation4], 0
    // Predicated region
    $region2: #{tpu_custom_call.1} parent=1 // pred_check
      _
    $region3: #{tpu_custom_call.1} parent=1 // pred_check_branch
      %14 = sbr.rel (0) target = $region5
    $region4: #{tpu_custom_call.1} parent=1 // pred_region
      _
    $region5: #{tpu_custom_call.1} parent=1 // pred_fallthru
      _
    // Predicated region
    $region6: #{tpu_custom_call.1} parent=1 // pred_check
      _
    $region7: #{tpu_custom_call.1} parent=1 // pred_check_branch
      %16 = sbr.rel (0) target = $region9
    $region8: #{tpu_custom_call.1} parent=1 // pred_region
      _
    $region9: #{tpu_custom_call.1} parent=1 // pred_fallthru
      _
    // Predicated region
    $region10: #{tpu_custom_call.1} parent=1 // pred_check
      _
    $region11: #{tpu_custom_call.1} parent=1 // pred_check_branch
      %18 = sbr.rel (0) target = $region13
    $region12: #{tpu_custom_call.1} parent=1 // pred_region
      _
    $region13: #{tpu_custom_call.1} parent=1 // pred_fallthru
      _
    // Predicated region
    $region14: #{tpu_custom_call.1} parent=1 // pred_check
      _
    $region15: #{tpu_custom_call.1} parent=1 // pred_check_branch
      %20 = sbr.rel (0) target = $region17
    $region16: #{tpu_custom_call.1} parent=1 // pred_region
      _
    $region17: #{tpu_custom_call.1} parent=1 // pred_fallthru
      _
    // Predicated region
    $region18: #{tpu_custom_call.1} parent=1 // pred_check
      _
    $region19: #{tpu_custom_call.1} parent=1 // pred_check_branch
      %22 = sbr.rel (0) target = $region21
    $region20: #{tpu_custom_call.1} parent=1 // pred_region
      _
    $region21: #{tpu_custom_call.1} parent=1 // pred_fallthru
      _
    // Predicated region
    $region22: #{tpu_custom_call.1} parent=1 // pred_check
      _
    $region23: #{tpu_custom_call.1} parent=1 // pred_check_branch
      %24 = sbr.rel (0) target = $region25
    $region24: #{tpu_custom_call.1} parent=1 // pred_region
      _
    $region25: #{tpu_custom_call.1} parent=1 // pred_fallthru
      _
    %v25 = vld [vmem:[%s0] sm:$0xff]
    %v26 = vld [vmem:[%s0 + $0x8] sm:$0xff]
    %v27 = vld [vmem:[%s0 + $0x10] sm:$0xff]
    %v28 = vld [vmem:[%s0 + $0x18] sm:$0xff]
    %v29 = vld [vmem:[%s0 + $0x20] sm:$0xff]
    %v30 = vld [vmem:[%s0 + $0x28] sm:$0xff]
    %v31 = vld [vmem:[%s0 + $0x30] sm:$0xff]
    %v32 = vld [vmem:[%s0 + $0x38] sm:$0xff]
    %v33 = vld [vmem:[%s0 + $0x40] sm:$0xff]
    %v34 = vld [vmem:[%s0 + $0x48] sm:$0xff]
    %v35 = vld [vmem:[%s0 + $0x50] sm:$0xff]
    %v36 = vld [vmem:[%s0 + $0x58] sm:$0xff]
    %v37 = vld [vmem:[%s0 + $0x60] sm:$0xff]
    %v38 = vld [vmem:[%s0 + $0x68] sm:$0xff]
    %v39 = vld [vmem:[%s0 + $0x70] sm:$0xff]
    %v40 = vld [vmem:[%s0 + $0x78] sm:$0xff]
    %v41 = vld [vmem:[%s3] sm:$0x1]
    %s42 = sld [smem:[#allocation2]]
    %v43 = vld [vmem:[%s2] sm:$0x3]
    %v44 = vld [vmem:[%s4] sm:$0x1]
    %v46 = vlaneseq
    %v47 = vshrl.u32 %v46, 7
    %v48 = vsub.s32 0, %v47
    %v49 = vrot.slane %v44, %v48
    %v51 = vmul.f32 %v43, %v49
    %vm52 = vcmask 254976
    %v53 = vsel %vm52, %v51, 0.0
    %54 = vadd.xlane.f32.xlu0 %v53
    %v55 = vpop.xlane.xlu0 %54
    %v56 = vld [vmem:[%s1] sm:$0xff]
    %vm57 = vcmask 261120
    %v59 = vsel %vm57, %v25, 0
    %v62 = vsel %vm57, %v26, 0
    %v65 = vsel %vm57, %v27, 0
    %v68 = vsel %vm57, %v28, 0
    %v71 = vsel %vm57, %v29, 0
    %v74 = vsel %vm57, %v30, 0
    %v77 = vsel %vm57, %v31, 0
    %v80 = vsel %vm57, %v32, 0
    %v83 = vsel %vm57, %v33, 0
    %v86 = vsel %vm57, %v34, 0
    %v89 = vsel %vm57, %v35, 0
    %v92 = vsel %vm57, %v36, 0
    %v95 = vsel %vm57, %v37, 0
    %v98 = vsel %vm57, %v38, 0
    %v101 = vsel %vm57, %v39, 0
    %v104 = vsel %vm57, %v40, 0
    %v107 = vsel %vm57, %v56, 0
    %109 = vmatprep.subr.mxu0 0.0
    %110 = vmatpush1.xpose.msra.mxu0 %v107
    %111 = vmatprep.subr.mxu0 0.0
    %112 = vmatpush1.xpose.msra.mxu0 0.0
    %113 = vmatprep.subr.mxu0 0.0
    %114 = vmatpush1.xpose.msra.mxu0 0.0
    %115 = vmatprep.subr.mxu0 0.0
    %116 = vmatpush1.xpose.msra.mxu0 0.0
    %117 = vmatprep.subr.mxu0 0.0
    %118 = vmatpush1.xpose.msra.mxu0 0.0
    %119 = vmatprep.subr.mxu0 0.0
    %120 = vmatpush1.xpose.msra.mxu0 0.0
    %121 = vmatprep.subr.mxu0 0.0
    %122 = vmatpush1.xpose.msra.mxu0 0.0
    %123 = vmatprep.subr.mxu0 0.0
    %124 = vmatpush1.xpose.msra.mxu0 0.0
    %125 = vmatprep.subr.mxu0 0.0
    %126 = vmatpush1.xpose.msra.mxu0 0.0
    %127 = vmatprep.subr.mxu0 0.0
    %128 = vmatpush1.xpose.msra.mxu0 0.0
    %129 = vmatprep.subr.mxu0 0.0
    %130 = vmatpush1.xpose.msra.mxu0 0.0
    %131 = vmatprep.subr.mxu0 0.0
    %132 = vmatpush1.xpose.msra.mxu0 0.0
    %133 = vmatprep.subr.mxu0 0.0
    %134 = vmatpush1.xpose.msra.mxu0 0.0
    %135 = vmatprep.subr.mxu0 0.0
    %136 = vmatpush1.xpose.msra.mxu0 0.0
    %137 = vmatprep.subr.mxu0 0.0
    %138 = vmatpush1.xpose.msra.mxu0 0.0
    %139 = vmatprep.subr.mxu0 0.0
    %140 = vmatpush1.xpose.msra.mxu0 0.0
    %141 = vmatprep.subr.mxu0 0.0
    %142 = vmatpush1.xpose.msra.mxu0 0.0
    %143 = vmatprep.subr.mxu0 0.0
    %144 = vmatpush1.xpose.msra.mxu0 0.0
    %145 = vmatprep.subr.mxu0 0.0
    %146 = vmatpush1.xpose.msra.mxu0 0.0
    %147 = vmatprep.subr.mxu0 0.0
    %148 = vmatpush1.xpose.msra.mxu0 0.0
    %149 = vmatprep.subr.mxu0 0.0
    %150 = vmatpush1.xpose.msra.mxu0 0.0
    %151 = vmatprep.subr.mxu0 0.0
    %152 = vmatpush1.xpose.msra.mxu0 0.0
    %153 = vmatprep.subr.mxu0 0.0
    %154 = vmatpush1.xpose.msra.mxu0 0.0
    %155 = vmatprep.subr.mxu0 0.0
    %156 = vmatpush1.xpose.msra.mxu0 0.0
    %157 = vmatprep.subr.mxu0 0.0
    %158 = vmatpush1.xpose.msra.mxu0 0.0
    %159 = vmatprep.subr.mxu0 0.0
    %160 = vmatpush1.xpose.msra.mxu0 0.0
    %161 = vmatprep.subr.mxu0 0.0
    %162 = vmatpush1.xpose.msra.mxu0 0.0
    %163 = vmatprep.subr.mxu0 0.0
    %164 = vmatpush1.xpose.msra.mxu0 0.0
    %165 = vmatprep.subr.mxu0 0.0
    %166 = vmatpush1.xpose.msra.mxu0 0.0
    %167 = vmatprep.subr.mxu0 0.0
    %168 = vmatpush1.xpose.msra.mxu0 0.0
    %169 = vmatprep.subr.mxu0 0.0
    %170 = vmatpush1.xpose.msra.mxu0 0.0
    %171 = vmatprep.subr.mxu0 0.0
    %172 = vmatpush1.xpose.msra.mxu0 0.0
    %173 = vmatprep.mubr.f32.mxu0 0.0
    %174 = vmatmul.mubr.f32.gmra.mrb[0].mxu0 %v59
    %v175 = vpop.f32.mrb[0].mxu0
    %v176 = vadd.f32 0.0, %v175
    %v177 = vpop.f32.mrb[0].mxu0
    %178 = vmatprep.mubr.f32.mxu0 0.0
    %179 = vmatmul.mubr.f32.gmra.mrb[0].mxu0 %v62
    %v180 = vpop.f32.mrb[0].mxu0
    %v181 = vadd.f32 0.0, %v180
    %v182 = vpop.f32.mrb[0].mxu0
    %183 = vmatprep.mubr.f32.mxu0 0.0
    %184 = vmatmul.mubr.f32.gmra.mrb[0].mxu0 %v65
    %v185 = vpop.f32.mrb[0].mxu0
    %v186 = vadd.f32 0.0, %v185
    %v187 = vpop.f32.mrb[0].mxu0
    %188 = vmatprep.mubr.f32.mxu0 0.0
    %189 = vmatmul.mubr.f32.gmra.mrb[0].mxu0 %v68
    %v190 = vpop.f32.mrb[0].mxu0
    %v191 = vadd.f32 0.0, %v190
    %v192 = vpop.f32.mrb[0].mxu0
    %193 = vmatprep.mubr.f32.mxu0 0.0
    %194 = vmatmul.mubr.f32.gmra.mrb[0].mxu0 %v71
    %v195 = vpop.f32.mrb[0].mxu0
    %v196 = vadd.f32 0.0, %v195
    %v197 = vpop.f32.mrb[0].mxu0
    %198 = vmatprep.mubr.f32.mxu0 0.0
    %199 = vmatmul.mubr.f32.gmra.mrb[0].mxu0 %v74
    %v200 = vpop.f32.mrb[0].mxu0
    %v201 = vadd.f32 0.0, %v200
    %v202 = vpop.f32.mrb[0].mxu0
    %203 = vmatprep.mubr.f32.mxu0 0.0
    %204 = vmatmul.mubr.f32.gmra.mrb[0].mxu0 %v77
    %v205 = vpop.f32.mrb[0].mxu0
    %v206 = vadd.f32 0.0, %v205
    %v207 = vpop.f32.mrb[0].mxu0
    %208 = vmatprep.mubr.f32.mxu0 0.0
    %209 = vmatmul.mubr.f32.gmra.mrb[0].mxu0 %v80
    %v210 = vpop.f32.mrb[0].mxu0
    %v211 = vadd.f32 0.0, %v210
    %v212 = vpop.f32.mrb[0].mxu0
    %213 = vmatprep.mubr.f32.mxu0 0.0
    %214 = vmatmul.mubr.f32.gmra.mrb[0].mxu0 %v83
    %v215 = vpop.f32.mrb[0].mxu0
    %v216 = vadd.f32 0.0, %v215
    %v217 = vpop.f32.mrb[0].mxu0
    %218 = vmatprep.mubr.f32.mxu0 0.0
    %219 = vmatmul.mubr.f32.gmra.mrb[0].mxu0 %v86
    %v220 = vpop.f32.mrb[0].mxu0
    %v221 = vadd.f32 0.0, %v220
    %v222 = vpop.f32.mrb[0].mxu0
    %223 = vmatprep.mubr.f32.mxu0 0.0
    %224 = vmatmul.mubr.f32.gmra.mrb[0].mxu0 %v89
    %v225 = vpop.f32.mrb[0].mxu0
    %v226 = vadd.f32 0.0, %v225
    %v227 = vpop.f32.mrb[0].mxu0
    %228 = vmatprep.mubr.f32.mxu0 0.0
    %229 = vmatmul.mubr.f32.gmra.mrb[0].mxu0 %v92
    %v230 = vpop.f32.mrb[0].mxu0
    %v231 = vadd.f32 0.0, %v230
    %v232 = vpop.f32.mrb[0].mxu0
    %233 = vmatprep.mubr.f32.mxu0 0.0
    %234 = vmatmul.mubr.f32.gmra.mrb[0].mxu0 %v95
    %v235 = vpop.f32.mrb[0].mxu0
    %v236 = vadd.f32 0.0, %v235
    %v237 = vpop.f32.mrb[0].mxu0
    %238 = vmatprep.mubr.f32.mxu0 0.0
    %239 = vmatmul.mubr.f32.gmra.mrb[0].mxu0 %v98
    %v240 = vpop.f32.mrb[0].mxu0
    %v241 = vadd.f32 0.0, %v240
    %v242 = vpop.f32.mrb[0].mxu0
    %243 = vmatprep.mubr.f32.mxu0 0.0
    %244 = vmatmul.mubr.f32.gmra.mrb[0].mxu0 %v101
    %v245 = vpop.f32.mrb[0].mxu0
    %v246 = vadd.f32 0.0, %v245
    %v247 = vpop.f32.mrb[0].mxu0
    %248 = vmatprep.mubr.f32.mxu0 0.0
    %249 = vmatmul.mubr.f32.gmra.mrb[0].mxu0 %v104
    %v250 = vpop.f32.mrb[0].mxu0
    %v251 = vadd.f32 0.0, %v250
    %v252 = vpop.f32.mrb[0].mxu0
    %253 = vdwg.mxu0
    %vm254 = vcmask 64512
    %v255 = vsel %vm254, %v176, -inf
    %256 = vmax.xlane.f32.xlu0 %v255
    %v257 = vpop.xlane.xlu0 %256
    %v258 = vsel %vm254, %v181, -inf
    %259 = vmax.xlane.f32.xlu0 %v258
    %v260 = vpop.xlane.xlu0 %259
    %v261 = vsel %vm254, %v186, -inf
    %262 = vmax.xlane.f32.xlu0 %v261
    %v263 = vpop.xlane.xlu0 %262
    %v264 = vsel %vm254, %v191, -inf
    %265 = vmax.xlane.f32.xlu0 %v264
    %v266 = vpop.xlane.xlu0 %265
    %v267 = vsel %vm254, %v196, -inf
    %268 = vmax.xlane.f32.xlu0 %v267
    %v269 = vpop.xlane.xlu0 %268
    %v270 = vsel %vm254, %v201, -inf
    %271 = vmax.xlane.f32.xlu0 %v270
    %v272 = vpop.xlane.xlu0 %271
    %v273 = vsel %vm254, %v206, -inf
    %274 = vmax.xlane.f32.xlu0 %v273
    %v275 = vpop.xlane.xlu0 %274
    %v276 = vsel %vm254, %v211, -inf
    %277 = vmax.xlane.f32.xlu0 %v276
    %v278 = vpop.xlane.xlu0 %277
    %v279 = vsel %vm254, %v216, -inf
    %280 = vmax.xlane.f32.xlu0 %v279
    %v281 = vpop.xlane.xlu0 %280
    %v282 = vsel %vm254, %v221, -inf
    %283 = vmax.xlane.f32.xlu0 %v282
    %v284 = vpop.xlane.xlu0 %283
    %v285 = vsel %vm254, %v226, -inf
    %286 = vmax.xlane.f32.xlu0 %v285
    %v287 = vpop.xlane.xlu0 %286
    %v288 = vsel %vm254, %v231, -inf
    %289 = vmax.xlane.f32.xlu0 %v288
    %v290 = vpop.xlane.xlu0 %289
    %v291 = vsel %vm254, %v236, -inf
    %292 = vmax.xlane.f32.xlu0 %v291
    %v293 = vpop.xlane.xlu0 %292
    %v294 = vsel %vm254, %v241, -inf
    %295 = vmax.xlane.f32.xlu0 %v294
    %v296 = vpop.xlane.xlu0 %295
    %v297 = vsel %vm254, %v246, -inf
    %298 = vmax.xlane.f32.xlu0 %v297
    %v299 = vpop.xlane.xlu0 %298
    %v300 = vsel %vm254, %v251, -inf
    %301 = vmax.xlane.f32.xlu0 %v300
    %v302 = vpop.xlane.xlu0 %301
    %v303 = vsub.f32 %v176, %v257
    %v304 = vsub.f32 %v181, %v260
    %v305 = vsub.f32 %v186, %v263
    %v306 = vsub.f32 %v191, %v266
    %v307 = vsub.f32 %v196, %v269
    %v308 = vsub.f32 %v201, %v272
    %v309 = vsub.f32 %v206, %v275
    %v310 = vsub.f32 %v211, %v278
    %v311 = vsub.f32 %v216, %v281
    %v312 = vsub.f32 %v221, %v284
    %v313 = vsub.f32 %v226, %v287
    %v314 = vsub.f32 %v231, %v290
    %v315 = vsub.f32 %v236, %v293
    %v316 = vsub.f32 %v241, %v296
    %v317 = vsub.f32 %v246, %v299
    %v318 = vsub.f32 %v251, %v302
    %v319 = vmul.f32 %v303, 1.442695
    %v320 = vpow.pop %v319
    %v321 = vmul.f32 %v304, 1.442695
    %v322 = vpow.pop %v321
    %v323 = vmul.f32 %v305, 1.442695
    %v324 = vpow.pop %v323
    %v325 = vmul.f32 %v306, 1.442695
    %v326 = vpow.pop %v325
    %v327 = vmul.f32 %v307, 1.442695
    %v328 = vpow.pop %v327
    %v329 = vmul.f32 %v308, 1.442695
    %v330 = vpow.pop %v329
    %v331 = vmul.f32 %v309, 1.442695
    %v332 = vpow.pop %v331
    %v333 = vmul.f32 %v310, 1.442695
    %v334 = vpow.pop %v333
    %v335 = vmul.f32 %v311, 1.442695
    %v336 = vpow.pop %v335
    %v337 = vmul.f32 %v312, 1.442695
    %v338 = vpow.pop %v337
    %v339 = vmul.f32 %v313, 1.442695
    %v340 = vpow.pop %v339
    %v341 = vmul.f32 %v314, 1.442695
    %v342 = vpow.pop %v341
    %v343 = vmul.f32 %v315, 1.442695
    %v344 = vpow.pop %v343
    %v345 = vmul.f32 %v316, 1.442695
    %v346 = vpow.pop %v345
    %v347 = vmul.f32 %v317, 1.442695
    %v348 = vpow.pop %v347
    %v349 = vmul.f32 %v318, 1.442695
    %v350 = vpow.pop %v349
    %v351 = vsel %vm254, %v320, 0.0
    %352 = vadd.xlane.f32.xlu0 %v351
    %v353 = vpop.xlane.xlu0 %352
    %v354 = vsel %vm254, %v322, 0.0
    %355 = vadd.xlane.f32.xlu0 %v354
    %v356 = vpop.xlane.xlu0 %355
    %v357 = vsel %vm254, %v324, 0.0
    %358 = vadd.xlane.f32.xlu0 %v357
    %v359 = vpop.xlane.xlu0 %358
    %v360 = vsel %vm254, %v326, 0.0
    %361 = vadd.xlane.f32.xlu0 %v360
    %v362 = vpop.xlane.xlu0 %361
    %v363 = vsel %vm254, %v328, 0.0
    %364 = vadd.xlane.f32.xlu0 %v363
    %v365 = vpop.xlane.xlu0 %364
    %v366 = vsel %vm254, %v330, 0.0
    %367 = vadd.xlane.f32.xlu0 %v366
    %v368 = vpop.xlane.xlu0 %367
    %v369 = vsel %vm254, %v332, 0.0
    %370 = vadd.xlane.f32.xlu0 %v369
    %v371 = vpop.xlane.xlu0 %370
    %v372 = vsel %vm254, %v334, 0.0
    %373 = vadd.xlane.f32.xlu0 %v372
    %v374 = vpop.xlane.xlu0 %373
    %v375 = vsel %vm254, %v336, 0.0
    %376 = vadd.xlane.f32.xlu0 %v375
    %v377 = vpop.xlane.xlu0 %376
    %v378 = vsel %vm254, %v338, 0.0
    %379 = vadd.xlane.f32.xlu0 %v378
    %v380 = vpop.xlane.xlu0 %379
    %v381 = vsel %vm254, %v340, 0.0
    %382 = vadd.xlane.f32.xlu0 %v381
    %v383 = vpop.xlane.xlu0 %382
    %v384 = vsel %vm254, %v342, 0.0
    %385 = vadd.xlane.f32.xlu0 %v384
    %v386 = vpop.xlane.xlu0 %385
    %v387 = vsel %vm254, %v344, 0.0
    %388 = vadd.xlane.f32.xlu0 %v387
    %v389 = vpop.xlane.xlu0 %388
    %v390 = vsel %vm254, %v346, 0.0
    %391 = vadd.xlane.f32.xlu0 %v390
    %v392 = vpop.xlane.xlu0 %391
    %v393 = vsel %vm254, %v348, 0.0
    %394 = vadd.xlane.f32.xlu0 %v393
    %v395 = vpop.xlane.xlu0 %394
    %v396 = vsel %vm254, %v350, 0.0
    %397 = vadd.xlane.f32.xlu0 %v396
    %v398 = vpop.xlane.xlu0 %397
    %v399 = vrcp.pop %v353
    %v400 = vmul.f32 %v320, %v399
    %v401 = vrcp.pop %v356
    %v402 = vmul.f32 %v322, %v401
    %v403 = vrcp.pop %v359
    %v404 = vmul.f32 %v324, %v403
    %v405 = vrcp.pop %v362
    %v406 = vmul.f32 %v326, %v405
    %v407 = vrcp.pop %v365
    %v408 = vmul.f32 %v328, %v407
    %v409 = vrcp.pop %v368
    %v410 = vmul.f32 %v330, %v409
    %v411 = vrcp.pop %v371
    %v412 = vmul.f32 %v332, %v411
    %v413 = vrcp.pop %v374
    %v414 = vmul.f32 %v334, %v413
    %v415 = vrcp.pop %v377
    %v416 = vmul.f32 %v336, %v415
    %v417 = vrcp.pop %v380
    %v418 = vmul.f32 %v338, %v417
    %v419 = vrcp.pop %v383
    %v420 = vmul.f32 %v340, %v419
    %v421 = vrcp.pop %v386
    %v422 = vmul.f32 %v342, %v421
    %v423 = vrcp.pop %v389
    %v424 = vmul.f32 %v344, %v423
    %v425 = vrcp.pop %v392
    %v426 = vmul.f32 %v346, %v425
    %v427 = vrcp.pop %v395
    %v428 = vmul.f32 %v348, %v427
    %v429 = vrcp.pop %v398
    %v430 = vmul.f32 %v350, %v429
    %v432 = vsel %vm254, %v400, 0
    %v435 = vsel %vm254, %v402, 0
    %v438 = vsel %vm254, %v404, 0
    %v441 = vsel %vm254, %v406, 0
    %v444 = vsel %vm254, %v408, 0
    %v447 = vsel %vm254, %v410, 0
    %v450 = vsel %vm254, %v412, 0
    %v453 = vsel %vm254, %v414, 0
    %v456 = vsel %vm254, %v416, 0
    %v459 = vsel %vm254, %v418, 0
    %v462 = vsel %vm254, %v420, 0
    %v465 = vsel %vm254, %v422, 0
    %v468 = vsel %vm254, %v424, 0
    %v471 = vsel %vm254, %v426, 0
    %v474 = vsel %vm254, %v428, 0
    %v477 = vsel %vm254, %v430, 0
    %479 = vmatprep.subr.mxu0 0.0
    %480 = vmatpush1.msra.mxu0 %v56
    %481 = vmatprep.subr.mxu0 0.0
    %482 = vmatpush1.msra.mxu0 0.0
    %483 = vmatprep.subr.mxu0 0.0
    %484 = vmatpush1.msra.mxu0 0.0
    %485 = vmatprep.subr.mxu0 0.0
    %486 = vmatpush1.msra.mxu0 0.0
    %487 = vmatprep.subr.mxu0 0.0
    %488 = vmatpush1.msra.mxu0 0.0
    %489 = vmatprep.subr.mxu0 0.0
    %490 = vmatpush1.msra.mxu0 0.0
    %491 = vmatprep.subr.mxu0 0.0
    %492 = vmatpush1.msra.mxu0 0.0
    %493 = vmatprep.subr.mxu0 0.0
    %494 = vmatpush1.msra.mxu0 0.0
    %495 = vmatprep.subr.mxu0 0.0
    %496 = vmatpush1.msra.mxu0 0.0
    %497 = vmatprep.subr.mxu0 0.0
    %498 = vmatpush1.msra.mxu0 0.0
    %499 = vmatprep.subr.mxu0 0.0
    %500 = vmatpush1.msra.mxu0 0.0
    %501 = vmatprep.subr.mxu0 0.0
    %502 = vmatpush1.msra.mxu0 0.0
    %503 = vmatprep.subr.mxu0 0.0
    %504 = vmatpush1.msra.mxu0 0.0
    %505 = vmatprep.subr.mxu0 0.0
    %506 = vmatpush1.msra.mxu0 0.0
    %507 = vmatprep.subr.mxu0 0.0
    %508 = vmatpush1.msra.mxu0 0.0
    %509 = vmatprep.subr.mxu0 0.0
    %510 = vmatpush1.msra.mxu0 0.0
    %511 = vmatprep.subr.mxu0 0.0
    %512 = vmatpush1.msra.mxu0 0.0
    %513 = vmatprep.subr.mxu0 0.0
    %514 = vmatpush1.msra.mxu0 0.0
    %515 = vmatprep.subr.mxu0 0.0
    %516 = vmatpush1.msra.mxu0 0.0
    %517 = vmatprep.subr.mxu0 0.0
    %518 = vmatpush1.msra.mxu0 0.0
    %519 = vmatprep.subr.mxu0 0.0
    %520 = vmatpush1.msra.mxu0 0.0
    %521 = vmatprep.subr.mxu0 0.0
    %522 = vmatpush1.msra.mxu0 0.0
    %523 = vmatprep.subr.mxu0 0.0
    %524 = vmatpush1.msra.mxu0 0.0
    %525 = vmatprep.subr.mxu0 0.0
    %526 = vmatpush1.msra.mxu0 0.0
    %527 = vmatprep.subr.mxu0 0.0
    %528 = vmatpush1.msra.mxu0 0.0
    %529 = vmatprep.subr.mxu0 0.0
    %530 = vmatpush1.msra.mxu0 0.0
    %531 = vmatprep.subr.mxu0 0.0
    %532 = vmatpush1.msra.mxu0 0.0
    %533 = vmatprep.subr.mxu0 0.0
    %534 = vmatpush1.msra.mxu0 0.0
    %535 = vmatprep.subr.mxu0 0.0
    %536 = vmatpush1.msra.mxu0 0.0
    %537 = vmatprep.subr.mxu0 0.0
    %538 = vmatpush1.msra.mxu0 0.0
    %539 = vmatprep.subr.mxu0 0.0
    %540 = vmatpush1.msra.mxu0 0.0
    %541 = vmatprep.subr.mxu0 0.0
    %542 = vmatpush1.msra.mxu0 0.0
    %543 = vmatprep.mubr.f32.mxu0 0.0
    %544 = vmatmul.mubr.f32.gmra.mrb[0].mxu0 %v432
    %v545 = vpop.f32.mrb[0].mxu0
    %v546 = vadd.f32 0.0, %v545
    %v547 = vpop.f32.mrb[0].mxu0
    %548 = vmatprep.mubr.f32.mxu0 0.0
    %549 = vmatmul.mubr.f32.gmra.mrb[0].mxu0 %v435
    %v550 = vpop.f32.mrb[0].mxu0
    %v551 = vadd.f32 0.0, %v550
    %v552 = vpop.f32.mrb[0].mxu0
    %553 = vmatprep.mubr.f32.mxu0 0.0
    %554 = vmatmul.mubr.f32.gmra.mrb[0].mxu0 %v438
    %v555 = vpop.f32.mrb[0].mxu0
    %v556 = vadd.f32 0.0, %v555
    %v557 = vpop.f32.mrb[0].mxu0
    %558 = vmatprep.mubr.f32.mxu0 0.0
    %559 = vmatmul.mubr.f32.gmra.mrb[0].mxu0 %v441
    %v560 = vpop.f32.mrb[0].mxu0
    %v561 = vadd.f32 0.0, %v560
    %v562 = vpop.f32.mrb[0].mxu0
    %563 = vmatprep.mubr.f32.mxu0 0.0
    %564 = vmatmul.mubr.f32.gmra.mrb[0].mxu0 %v444
    %v565 = vpop.f32.mrb[0].mxu0
    %v566 = vadd.f32 0.0, %v565
    %v567 = vpop.f32.mrb[0].mxu0
    %568 = vmatprep.mubr.f32.mxu0 0.0
    %569 = vmatmul.mubr.f32.gmra.mrb[0].mxu0 %v447
    %v570 = vpop.f32.mrb[0].mxu0
    %v571 = vadd.f32 0.0, %v570
    %v572 = vpop.f32.mrb[0].mxu0
    %573 = vmatprep.mubr.f32.mxu0 0.0
    %574 = vmatmul.mubr.f32.gmra.mrb[0].mxu0 %v450
    %v575 = vpop.f32.mrb[0].mxu0
    %v576 = vadd.f32 0.0, %v575
    %v577 = vpop.f32.mrb[0].mxu0
    %578 = vmatprep.mubr.f32.mxu0 0.0
    %579 = vmatmul.mubr.f32.gmra.mrb[0].mxu0 %v453
    %v580 = vpop.f32.mrb[0].mxu0
    %v581 = vadd.f32 0.0, %v580
    %v582 = vpop.f32.mrb[0].mxu0
    %583 = vmatprep.mubr.f32.mxu0 0.0
    %584 = vmatmul.mubr.f32.gmra.mrb[0].mxu0 %v456
    %v585 = vpop.f32.mrb[0].mxu0
    %v586 = vadd.f32 0.0, %v585
    %v587 = vpop.f32.mrb[0].mxu0
    %588 = vmatprep.mubr.f32.mxu0 0.0
    %589 = vmatmul.mubr.f32.gmra.mrb[0].mxu0 %v459
    %v590 = vpop.f32.mrb[0].mxu0
    %v591 = vadd.f32 0.0, %v590
    %v592 = vpop.f32.mrb[0].mxu0
    %593 = vmatprep.mubr.f32.mxu0 0.0
    %594 = vmatmul.mubr.f32.gmra.mrb[0].mxu0 %v462
    %v595 = vpop.f32.mrb[0].mxu0
    %v596 = vadd.f32 0.0, %v595
    %v597 = vpop.f32.mrb[0].mxu0
    %598 = vmatprep.mubr.f32.mxu0 0.0
    %599 = vmatmul.mubr.f32.gmra.mrb[0].mxu0 %v465
    %v600 = vpop.f32.mrb[0].mxu0
    %v601 = vadd.f32 0.0, %v600
    %v602 = vpop.f32.mrb[0].mxu0
    %603 = vmatprep.mubr.f32.mxu0 0.0
    %604 = vmatmul.mubr.f32.gmra.mrb[0].mxu0 %v468
    %v605 = vpop.f32.mrb[0].mxu0
    %v606 = vadd.f32 0.0, %v605
    %v607 = vpop.f32.mrb[0].mxu0
    %608 = vmatprep.mubr.f32.mxu0 0.0
    %609 = vmatmul.mubr.f32.gmra.mrb[0].mxu0 %v471
    %v610 = vpop.f32.mrb[0].mxu0
    %v611 = vadd.f32 0.0, %v610
    %v612 = vpop.f32.mrb[0].mxu0
    %613 = vmatprep.mubr.f32.mxu0 0.0
    %614 = vmatmul.mubr.f32.gmra.mrb[0].mxu0 %v474
    %v615 = vpop.f32.mrb[0].mxu0
    %v616 = vadd.f32 0.0, %v615
    %v617 = vpop.f32.mrb[0].mxu0
    %618 = vmatprep.mubr.f32.mxu0 0.0
    %619 = vmatmul.mubr.f32.gmra.mrb[0].mxu0 %v477
    %v620 = vpop.f32.mrb[0].mxu0
    %v621 = vadd.f32 0.0, %v620
    %v622 = vpop.f32.mrb[0].mxu0
    %623 = vdwg.mxu0
    %v625 = vsel %vm57, %v41, 0
    %v628 = vsel %vm57, %v546, 0
    %v631 = vsel %vm57, %v551, 0
    %v634 = vsel %vm57, %v556, 0
    %v637 = vsel %vm57, %v561, 0
    %v640 = vsel %vm57, %v566, 0
    %v643 = vsel %vm57, %v571, 0
    %v646 = vsel %vm57, %v576, 0
    %v649 = vsel %vm57, %v581, 0
    %v652 = vsel %vm57, %v586, 0
    %v655 = vsel %vm57, %v591, 0
    %v658 = vsel %vm57, %v596, 0
    %v661 = vsel %vm57, %v601, 0
    %v664 = vsel %vm57, %v606, 0
    %v667 = vsel %vm57, %v611, 0
    %v670 = vsel %vm57, %v616, 0
    %v673 = vsel %vm57, %v621, 0
    %675 = vmatprep.subr.mxu0 0.0
    %676 = vmatpush1.xpose.msra.mxu0 %v628
    %677 = vmatprep.subr.mxu0 0.0
    %678 = vmatpush1.xpose.msra.mxu0 %v631
    %679 = vmatprep.subr.mxu0 0.0
    %680 = vmatpush1.xpose.msra.mxu0 %v634
    %681 = vmatprep.subr.mxu0 0.0
    %682 = vmatpush1.xpose.msra.mxu0 %v637
    %683 = vmatprep.subr.mxu0 0.0
    %684 = vmatpush1.xpose.msra.mxu0 %v640
    %685 = vmatprep.subr.mxu0 0.0
    %686 = vmatpush1.xpose.msra.mxu0 %v643
    %687 = vmatprep.subr.mxu0 0.0
    %688 = vmatpush1.xpose.msra.mxu0 %v646
    %689 = vmatprep.subr.mxu0 0.0
    %690 = vmatpush1.xpose.msra.mxu0 %v649
    %691 = vmatprep.subr.mxu0 0.0
    %692 = vmatpush1.xpose.msra.mxu0 %v652
    %693 = vmatprep.subr.mxu0 0.0
    %694 = vmatpush1.xpose.msra.mxu0 %v655
    %695 = vmatprep.subr.mxu0 0.0
    %696 = vmatpush1.xpose.msra.mxu0 %v658
    %697 = vmatprep.subr.mxu0 0.0
    %698 = vmatpush1.xpose.msra.mxu0 %v661
    %699 = vmatprep.subr.mxu0 0.0
    %700 = vmatpush1.xpose.msra.mxu0 %v664
    %701 = vmatprep.subr.mxu0 0.0
    %702 = vmatpush1.xpose.msra.mxu0 %v667
    %703 = vmatprep.subr.mxu0 0.0
    %704 = vmatpush1.xpose.msra.mxu0 %v670
    %705 = vmatprep.subr.mxu0 0.0
    %706 = vmatpush1.xpose.msra.mxu0 %v673
    %707 = vmatprep.subr.mxu0 0.0
    %708 = vmatpush1.xpose.msra.mxu0 0.0
    %709 = vmatprep.subr.mxu0 0.0
    %710 = vmatpush1.xpose.msra.mxu0 0.0
    %711 = vmatprep.subr.mxu0 0.0
    %712 = vmatpush1.xpose.msra.mxu0 0.0
    %713 = vmatprep.subr.mxu0 0.0
    %714 = vmatpush1.xpose.msra.mxu0 0.0
    %715 = vmatprep.subr.mxu0 0.0
    %716 = vmatpush1.xpose.msra.mxu0 0.0
    %717 = vmatprep.subr.mxu0 0.0
    %718 = vmatpush1.xpose.msra.mxu0 0.0
    %719 = vmatprep.subr.mxu0 0.0
    %720 = vmatpush1.xpose.msra.mxu0 0.0
    %721 = vmatprep.subr.mxu0 0.0
    %722 = vmatpush1.xpose.msra.mxu0 0.0
    %723 = vmatprep.subr.mxu0 0.0
    %724 = vmatpush1.xpose.msra.mxu0 0.0
    %725 = vmatprep.subr.mxu0 0.0
    %726 = vmatpush1.xpose.msra.mxu0 0.0
    %727 = vmatprep.subr.mxu0 0.0
    %728 = vmatpush1.xpose.msra.mxu0 0.0
    %729 = vmatprep.subr.mxu0 0.0
    %730 = vmatpush1.xpose.msra.mxu0 0.0
    %731 = vmatprep.subr.mxu0 0.0
    %732 = vmatpush1.xpose.msra.mxu0 0.0
    %733 = vmatprep.subr.mxu0 0.0
    %734 = vmatpush1.xpose.msra.mxu0 0.0
    %735 = vmatprep.subr.mxu0 0.0
    %736 = vmatpush1.xpose.msra.mxu0 0.0
    %737 = vmatprep.subr.mxu0 0.0
    %738 = vmatpush1.xpose.msra.mxu0 0.0
    %739 = vmatprep.mubr.f32.mxu0 0.0
    %740 = vmatmul.mubr.f32.gmra.mrb[0].mxu0 %v625
    %v741 = vpop.f32.mrb[0].mxu0
    %v742 = vadd.f32 %v55, %v741
    %v743 = vpop.f32.mrb[0].mxu0
    %744 = vdwg.mxu0
    %v745 = vstv %s42
    %v746 = vadd.f32 %v742, %v745
    %747 = vst [vmem:[#allocation3] sm:$0x1] %v746
    %s748 = scalar_lea.vmem %s1, 8
    %v749 = vld [vmem:[%s748] sm:$0xff]
    %v751 = vsel %vm57, %v749, 0
    %753 = vmatprep.subr.mxu0 0.0
    %754 = vmatpush1.xpose.msra.mxu0 %v751
    %755 = vmatprep.subr.mxu0 0.0
    %756 = vmatpush1.xpose.msra.mxu0 0.0
    %757 = vmatprep.subr.mxu0 0.0
    %758 = vmatpush1.xpose.msra.mxu0 0.0
    %759 = vmatprep.subr.mxu0 0.0
    %760 = vmatpush1.xpose.msra.mxu0 0.0
    %761 = vmatprep.subr.mxu0 0.0
    %762 = vmatpush1.xpose.msra.mxu0 0.0
    %763 = vmatprep.subr.mxu0 0.0
    %764 = vmatpush1.xpose.msra.mxu0 0.0
    %765 = vmatprep.subr.mxu0 0.0
    %766 = vmatpush1.xpose.msra.mxu0 0.0
    %767 = vmatprep.subr.mxu0 0.0
    %768 = vmatpush1.xpose.msra.mxu0 0.0
    %769 = vmatprep.subr.mxu0 0.0
    %770 = vmatpush1.xpose.msra.mxu0 0.0
    %771 = vmatprep.subr.mxu0 0.0
    %772 = vmatpush1.xpose.msra.mxu0 0.0
    %773 = vmatprep.subr.mxu0 0.0
    %774 = vmatpush1.xpose.msra.mxu0 0.0
    %775 = vmatprep.subr.mxu0 0.0
    %776 = vmatpush1.xpose.msra.mxu0 0.0
    %777 = vmatprep.subr.mxu0 0.0
    %778 = vmatpush1.xpose.msra.mxu0 0.0
    %779 = vmatprep.subr.mxu0 0.0
    %780 = vmatpush1.xpose.msra.mxu0 0.0
    %781 = vmatprep.subr.mxu0 0.0
    %782 = vmatpush1.xpose.msra.mxu0 0.0
    %783 = vmatprep.subr.mxu0 0.0
    %784 = vmatpush1.xpose.msra.mxu0 0.0
    %785 = vmatprep.subr.mxu0 0.0
    %786 = vmatpush1.xpose.msra.mxu0 0.0
    %787 = vmatprep.subr.mxu0 0.0
    %788 = vmatpush1.xpose.msra.mxu0 0.0
    %789 = vmatprep.subr.mxu0 0.0
    %790 = vmatpush1.xpose.msra.mxu0 0.0
    %791 = vmatprep.subr.mxu0 0.0
    %792 = vmatpush1.xpose.msra.mxu0 0.0
    %793 = vmatprep.subr.mxu0 0.0
    %794 = vmatpush1.xpose.msra.mxu0 0.0
    %795 = vmatprep.subr.mxu0 0.0
    %796 = vmatpush1.xpose.msra.mxu0 0.0
    %797 = vmatprep.subr.mxu0 0.0
    %798 = vmatpush1.xpose.msra.mxu0 0.0
    %799 = vmatprep.subr.mxu0 0.0
    %800 = vmatpush1.xpose.msra.mxu0 0.0
    %801 = vmatprep.subr.mxu0 0.0
    %802 = vmatpush1.xpose.msra.mxu0 0.0
    %803 = vmatprep.subr.mxu0 0.0
    %804 = vmatpush1.xpose.msra.mxu0 0.0
    %805 = vmatprep.subr.mxu0 0.0
    %806 = vmatpush1.xpose.msra.mxu0 0.0
    %807 = vmatprep.subr.mxu0 0.0
    %808 = vmatpush1.xpose.msra.mxu0 0.0
    %809 = vmatprep.subr.mxu0 0.0
    %810 = vmatpush1.xpose.msra.mxu0 0.0
    %811 = vmatprep.subr.mxu0 0.0
    %812 = vmatpush1.xpose.msra.mxu0 0.0
    %813 = vmatprep.subr.mxu0 0.0
    %814 = vmatpush1.xpose.msra.mxu0 0.0
    %815 = vmatprep.subr.mxu0 0.0
    %816 = vmatpush1.xpose.msra.mxu0 0.0
    %817 = vmatprep.mubr.f32.mxu0 0.0
    %818 = vmatmul.mubr.f32.gmra.mrb[0].mxu0 %v59
    %v819 = vpop.f32.mrb[0].mxu0
    %v820 = vadd.f32 0.0, %v819
    %v821 = vpop.f32.mrb[0].mxu0
    %822 = vmatprep.mubr.f32.mxu0 0.0
    %823 = vmatmul.mubr.f32.gmra.mrb[0].mxu0 %v62
    %v824 = vpop.f32.mrb[0].mxu0
    %v825 = vadd.f32 0.0, %v824
    %v826 = vpop.f32.mrb[0].mxu0
    %827 = vmatprep.mubr.f32.mxu0 0.0
    %828 = vmatmul.mubr.f32.gmra.mrb[0].mxu0 %v65
    %v829 = vpop.f32.mrb[0].mxu0
    %v830 = vadd.f32 0.0, %v829
    %v831 = vpop.f32.mrb[0].mxu0
    %832 = vmatprep.mubr.f32.mxu0 0.0
    %833 = vmatmul.mubr.f32.gmra.mrb[0].mxu0 %v68
    %v834 = vpop.f32.mrb[0].mxu0
    %v835 = vadd.f32 0.0, %v834
    %v836 = vpop.f32.mrb[0].mxu0
    %837 = vmatprep.mubr.f32.mxu0 0.0
    %838 = vmatmul.mubr.f32.gmra.mrb[0].mxu0 %v71
    %v839 = vpop.f32.mrb[0].mxu0
    %v840 = vadd.f32 0.0, %v839
    %v841 = vpop.f32.mrb[0].mxu0
    %842 = vmatprep.mubr.f32.mxu0 0.0
    %843 = vmatmul.mubr.f32.gmra.mrb[0].mxu0 %v74
    %v844 = vpop.f32.mrb[0].mxu0
    %v845 = vadd.f32 0.0, %v844
    %v846 = vpop.f32.mrb[0].mxu0
    %847 = vmatprep.mubr.f32.mxu0 0.0
    %848 = vmatmul.mubr.f32.gmra.mrb[0].mxu0 %v77
    %v849 = vpop.f32.mrb[0].mxu0
    %v850 = vadd.f32 0.0, %v849
    %v851 = vpop.f32.mrb[0].mxu0
    %852 = vmatprep.mubr.f32.mxu0 0.0
    %853 = vmatmul.mubr.f32.gmra.mrb[0].mxu0 %v80
    %v854 = vpop.f32.mrb[0].mxu0
    %v855 = vadd.f32 0.0, %v854
    %v856 = vpop.f32.mrb[0].mxu0
    %857 = vmatprep.mubr.f32.mxu0 0.0
    %858 = vmatmul.mubr.f32.gmra.mrb[0].mxu0 %v83
    %v859 = vpop.f32.mrb[0].mxu0
    %v860 = vadd.f32 0.0, %v859
    %v861 = vpop.f32.mrb[0].mxu0
    %862 = vmatprep.mubr.f32.mxu0 0.0
    %863 = vmatmul.mubr.f32.gmra.mrb[0].mxu0 %v86
    %v864 = vpop.f32.mrb[0].mxu0
    %v865 = vadd.f32 0.0, %v864
    %v866 = vpop.f32.mrb[0].mxu0
    %867 = vmatprep.mubr.f32.mxu0 0.0
    %868 = vmatmul.mubr.f32.gmra.mrb[0].mxu0 %v89
    %v869 = vpop.f32.mrb[0].mxu0
    %v870 = vadd.f32 0.0, %v869
    %v871 = vpop.f32.mrb[0].mxu0
    %872 = vmatprep.mubr.f32.mxu0 0.0
    %873 = vmatmul.mubr.f32.gmra.mrb[0].mxu0 %v92
    %v874 = vpop.f32.mrb[0].mxu0
    %v875 = vadd.f32 0.0, %v874
    %v876 = vpop.f32.mrb[0].mxu0
    %877 = vmatprep.mubr.f32.mxu0 0.0
    %878 = vmatmul.mubr.f32.gmra.mrb[0].mxu0 %v95
    %v879 = vpop.f32.mrb[0].mxu0
    %v880 = vadd.f32 0.0, %v879
    %v881 = vpop.f32.mrb[0].mxu0
    %882 = vmatprep.mubr.f32.mxu0 0.0
    %883 = vmatmul.mubr.f32.gmra.mrb[0].mxu0 %v98
    %v884 = vpop.f32.mrb[0].mxu0
    %v885 = vadd.f32 0.0, %v884
    %v886 = vpop.f32.mrb[0].mxu0
    %887 = vmatprep.mubr.f32.mxu0 0.0
    %888 = vmatmul.mubr.f32.gmra.mrb[0].mxu0 %v101
    %v889 = vpop.f32.mrb[0].mxu0
    %v890 = vadd.f32 0.0, %v889
    %v891 = vpop.f32.mrb[0].mxu0
    %892 = vmatprep.mubr.f32.mxu0 0.0
    %893 = vmatmul.mubr.f32.gmra.mrb[0].mxu0 %v104
    %v894 = vpop.f32.mrb[0].mxu0
    %v895 = vadd.f32 0.0, %v894
    %v896 = vpop.f32.mrb[0].mxu0
    %897 = vdwg.mxu0
    %v898 = vsel %vm254, %v820, -inf
    %899 = vmax.xlane.f32.xlu0 %v898
    %v900 = vpop.xlane.xlu0 %899
    %v901 = vsel %vm254, %v825, -inf
    %902 = vmax.xlane.f32.xlu0 %v901
    %v903 = vpop.xlane.xlu0 %902
    %v904 = vsel %vm254, %v830, -inf
    %905 = vmax.xlane.f32.xlu0 %v904
    %v906 = vpop.xlane.xlu0 %905
    %v907 = vsel %vm254, %v835, -inf
    %908 = vmax.xlane.f32.xlu0 %v907
    %v909 = vpop.xlane.xlu0 %908
    %v910 = vsel %vm254, %v840, -inf
    %911 = vmax.xlane.f32.xlu0 %v910
    %v912 = vpop.xlane.xlu0 %911
    %v913 = vsel %vm254, %v845, -inf
    %914 = vmax.xlane.f32.xlu0 %v913
    %v915 = vpop.xlane.xlu0 %914
    %v916 = vsel %vm254, %v850, -inf
    %917 = vmax.xlane.f32.xlu0 %v916
    %v918 = vpop.xlane.xlu0 %917
    %v919 = vsel %vm254, %v855, -inf
    %920 = vmax.xlane.f32.xlu0 %v919
    %v921 = vpop.xlane.xlu0 %920
    %v922 = vsel %vm254, %v860, -inf
    %923 = vmax.xlane.f32.xlu0 %v922
    %v924 = vpop.xlane.xlu0 %923
    %v925 = vsel %vm254, %v865, -inf
    %926 = vmax.xlane.f32.xlu0 %v925
    %v927 = vpop.xlane.xlu0 %926
    %v928 = vsel %vm254, %v870, -inf
    %929 = vmax.xlane.f32.xlu0 %v928
    %v930 = vpop.xlane.xlu0 %929
    %v931 = vsel %vm254, %v875, -inf
    %932 = vmax.xlane.f32.xlu0 %v931
    %v933 = vpop.xlane.xlu0 %932
    %v934 = vsel %vm254, %v880, -inf
    %935 = vmax.xlane.f32.xlu0 %v934
    %v936 = vpop.xlane.xlu0 %935
    %v937 = vsel %vm254, %v885, -inf
    %938 = vmax.xlane.f32.xlu0 %v937
    %v939 = vpop.xlane.xlu0 %938
    %v940 = vsel %vm254, %v890, -inf
    %941 = vmax.xlane.f32.xlu0 %v940
    %v942 = vpop.xlane.xlu0 %941
    %v943 = vsel %vm254, %v895, -inf
    %944 = vmax.xlane.f32.xlu0 %v943
    %v945 = vpop.xlane.xlu0 %944
    %v946 = vsub.f32 %v820, %v900
    %v947 = vsub.f32 %v825, %v903
    %v948 = vsub.f32 %v830, %v906
    %v949 = vsub.f32 %v835, %v909
    %v950 = vsub.f32 %v840, %v912
    %v951 = vsub.f32 %v845, %v915
    %v952 = vsub.f32 %v850, %v918
    %v953 = vsub.f32 %v855, %v921
    %v954 = vsub.f32 %v860, %v924
    %v955 = vsub.f32 %v865, %v927
    %v956 = vsub.f32 %v870, %v930
    %v957 = vsub.f32 %v875, %v933
    %v958 = vsub.f32 %v880, %v936
    %v959 = vsub.f32 %v885, %v939
    %v960 = vsub.f32 %v890, %v942
    %v961 = vsub.f32 %v895, %v945
    %v962 = vmul.f32 %v946, 1.442695
    %v963 = vpow.pop %v962
    %v964 = vmul.f32 %v947, 1.442695
    %v965 = vpow.pop %v964
    %v966 = vmul.f32 %v948, 1.442695
    %v967 = vpow.pop %v966
    %v968 = vmul.f32 %v949, 1.442695
    %v969 = vpow.pop %v968
    %v970 = vmul.f32 %v950, 1.442695
    %v971 = vpow.pop %v970
    %v972 = vmul.f32 %v951, 1.442695
    %v973 = vpow.pop %v972
    %v974 = vmul.f32 %v952, 1.442695
    %v975 = vpow.pop %v974
    %v976 = vmul.f32 %v953, 1.442695
    %v977 = vpow.pop %v976
    %v978 = vmul.f32 %v954, 1.442695
    %v979 = vpow.pop %v978
    %v980 = vmul.f32 %v955, 1.442695
    %v981 = vpow.pop %v980
    %v982 = vmul.f32 %v956, 1.442695
    %v983 = vpow.pop %v982
    %v984 = vmul.f32 %v957, 1.442695
    %v985 = vpow.pop %v984
    %v986 = vmul.f32 %v958, 1.442695
    %v987 = vpow.pop %v986
    %v988 = vmul.f32 %v959, 1.442695
    %v989 = vpow.pop %v988
    %v990 = vmul.f32 %v960, 1.442695
    %v991 = vpow.pop %v990
    %v992 = vmul.f32 %v961, 1.442695
    %v993 = vpow.pop %v992
    %v994 = vsel %vm254, %v963, 0.0
    %995 = vadd.xlane.f32.xlu0 %v994
    %v996 = vpop.xlane.xlu0 %995
    %v997 = vsel %vm254, %v965, 0.0
    %998 = vadd.xlane.f32.xlu0 %v997
    %v999 = vpop.xlane.xlu0 %998
    %v1000 = vsel %vm254, %v967, 0.0
    %1001 = vadd.xlane.f32.xlu0 %v1000
    %v1002 = vpop.xlane.xlu0 %1001
    %v1003 = vsel %vm254, %v969, 0.0
    %1004 = vadd.xlane.f32.xlu0 %v1003
    %v1005 = vpop.xlane.xlu0 %1004
    %v1006 = vsel %vm254, %v971, 0.0
    %1007 = vadd.xlane.f32.xlu0 %v1006
    %v1008 = vpop.xlane.xlu0 %1007
    %v1009 = vsel %vm254, %v973, 0.0
    %1010 = vadd.xlane.f32.xlu0 %v1009
    %v1011 = vpop.xlane.xlu0 %1010
    %v1012 = vsel %vm254, %v975, 0.0
    %1013 = vadd.xlane.f32.xlu0 %v1012
    %v1014 = vpop.xlane.xlu0 %1013
    %v1015 = vsel %vm254, %v977, 0.0
    %1016 = vadd.xlane.f32.xlu0 %v1015
    %v1017 = vpop.xlane.xlu0 %1016
    %v1018 = vsel %vm254, %v979, 0.0
    %1019 = vadd.xlane.f32.xlu0 %v1018
    %v1020 = vpop.xlane.xlu0 %1019
    %v1021 = vsel %vm254, %v981, 0.0
    %1022 = vadd.xlane.f32.xlu0 %v1021
    %v1023 = vpop.xlane.xlu0 %1022
    %v1024 = vsel %vm254, %v983, 0.0
    %1025 = vadd.xlane.f32.xlu0 %v1024
    %v1026 = vpop.xlane.xlu0 %1025
    %v1027 = vsel %vm254, %v985, 0.0
    %1028 = vadd.xlane.f32.xlu0 %v1027
    %v1029 = vpop.xlane.xlu0 %1028
    %v1030 = vsel %vm254, %v987, 0.0
    %1031 = vadd.xlane.f32.xlu0 %v1030
    %v1032 = vpop.xlane.xlu0 %1031
    %v1033 = vsel %vm254, %v989, 0.0
    %1034 = vadd.xlane.f32.xlu0 %v1033
    %v1035 = vpop.xlane.xlu0 %1034
    %v1036 = vsel %vm254, %v991, 0.0
    %1037 = vadd.xlane.f32.xlu0 %v1036
    %v1038 = vpop.xlane.xlu0 %1037
    %v1039 = vsel %vm254, %v993, 0.0
    %1040 = vadd.xlane.f32.xlu0 %v1039
    %v1041 = vpop.xlane.xlu0 %1040
    %v1042 = vrcp.pop %v996
    %v1043 = vmul.f32 %v963, %v1042
    %v1044 = vrcp.pop %v999
    %v1045 = vmul.f32 %v965, %v1044
    %v1046 = vrcp.pop %v1002
    %v1047 = vmul.f32 %v967, %v1046
    %v1048 = vrcp.pop %v1005
    %v1049 = vmul.f32 %v969, %v1048
    %v1050 = vrcp.pop %v1008
    %v1051 = vmul.f32 %v971, %v1050
    %v1052 = vrcp.pop %v1011
    %v1053 = vmul.f32 %v973, %v1052
    %v1054 = vrcp.pop %v1014
    %v1055 = vmul.f32 %v975, %v1054
    %v1056 = vrcp.pop %v1017
    %v1057 = vmul.f32 %v977, %v1056
    %v1058 = vrcp.pop %v1020
    %v1059 = vmul.f32 %v979, %v1058
    %v1060 = vrcp.pop %v1023
    %v1061 = vmul.f32 %v981, %v1060
    %v1062 = vrcp.pop %v1026
    %v1063 = vmul.f32 %v983, %v1062
    %v1064 = vrcp.pop %v1029
    %v1065 = vmul.f32 %v985, %v1064
    %v1066 = vrcp.pop %v1032
    %v1067 = vmul.f32 %v987, %v1066
    %v1068 = vrcp.pop %v1035
    %v1069 = vmul.f32 %v989, %v1068
    %v1070 = vrcp.pop %v1038
    %v1071 = vmul.f32 %v991, %v1070
    %v1072 = vrcp.pop %v1041
    %v1073 = vmul.f32 %v993, %v1072
    %v1075 = vsel %vm254, %v1043, 0
    %v1078 = vsel %vm254, %v1045, 0
    %v1081 = vsel %vm254, %v1047, 0
    %v1084 = vsel %vm254, %v1049, 0
    %v1087 = vsel %vm254, %v1051, 0
    %v1090 = vsel %vm254, %v1053, 0
    %v1093 = vsel %vm254, %v1055, 0
    %v1096 = vsel %vm254, %v1057, 0
    %v1099 = vsel %vm254, %v1059, 0
    %v1102 = vsel %vm254, %v1061, 0
    %v1105 = vsel %vm254, %v1063, 0
    %v1108 = vsel %vm254, %v1065, 0
    %v1111 = vsel %vm254, %v1067, 0
    %v1114 = vsel %vm254, %v1069, 0
    %v1117 = vsel %vm254, %v1071, 0
    %v1120 = vsel %vm254, %v1073, 0
    %1122 = vmatprep.subr.mxu0 0.0
    %1123 = vmatpush1.msra.mxu0 %v749
    %1124 = vmatprep.subr.mxu0 0.0
    %1125 = vmatpush1.msra.mxu0 0.0
    %1126 = vmatprep.subr.mxu0 0.0
    %1127 = vmatpush1.msra.mxu0 0.0
    %1128 = vmatprep.subr.mxu0 0.0
    %1129 = vmatpush1.msra.mxu0 0.0
    %1130 = vmatprep.subr.mxu0 0.0
    %1131 = vmatpush1.msra.mxu0 0.0
    %1132 = vmatprep.subr.mxu0 0.0
    %1133 = vmatpush1.msra.mxu0 0.0
    %1134 = vmatprep.subr.mxu0 0.0
    %1135 = vmatpush1.msra.mxu0 0.0
    %1136 = vmatprep.subr.mxu0 0.0
    %1137 = vmatpush1.msra.mxu0 0.0
    %1138 = vmatprep.subr.mxu0 0.0
    %1139 = vmatpush1.msra.mxu0 0.0
    %1140 = vmatprep.subr.mxu0 0.0
    %1141 = vmatpush1.msra.mxu0 0.0
    %1142 = vmatprep.subr.mxu0 0.0
    %1143 = vmatpush1.msra.mxu0 0.0
    %1144 = vmatprep.subr.mxu0 0.0
    %1145 = vmatpush1.msra.mxu0 0.0
    %1146 = vmatprep.subr.mxu0 0.0
    %1147 = vmatpush1.msra.mxu0 0.0
    %1148 = vmatprep.subr.mxu0 0.0
    %1149 = vmatpush1.msra.mxu0 0.0
    %1150 = vmatprep.subr.mxu0 0.0
    %1151 = vmatpush1.msra.mxu0 0.0
    %1152 = vmatprep.subr.mxu0 0.0
    %1153 = vmatpush1.msra.mxu0 0.0
    %1154 = vmatprep.subr.mxu0 0.0
    %1155 = vmatpush1.msra.mxu0 0.0
    %1156 = vmatprep.subr.mxu0 0.0
    %1157 = vmatpush1.msra.mxu0 0.0
    %1158 = vmatprep.subr.mxu0 0.0
    %1159 = vmatpush1.msra.mxu0 0.0
    %1160 = vmatprep.subr.mxu0 0.0
    %1161 = vmatpush1.msra.mxu0 0.0
    %1162 = vmatprep.subr.mxu0 0.0
    %1163 = vmatpush1.msra.mxu0 0.0
    %1164 = vmatprep.subr.mxu0 0.0
    %1165 = vmatpush1.msra.mxu0 0.0
    %1166 = vmatprep.subr.mxu0 0.0
    %1167 = vmatpush1.msra.mxu0 0.0
    %1168 = vmatprep.subr.mxu0 0.0
    %1169 = vmatpush1.msra.mxu0 0.0
    %1170 = vmatprep.subr.mxu0 0.0
    %1171 = vmatpush1.msra.mxu0 0.0
    %1172 = vmatprep.subr.mxu0 0.0
    %1173 = vmatpush1.msra.mxu0 0.0
    %1174 = vmatprep.subr.mxu0 0.0
    %1175 = vmatpush1.msra.mxu0 0.0
    %1176 = vmatprep.subr.mxu0 0.0
    %1177 = vmatpush1.msra.mxu0 0.0
    %1178 = vmatprep.subr.mxu0 0.0
    %1179 = vmatpush1.msra.mxu0 0.0
    %1180 = vmatprep.subr.mxu0 0.0
    %1181 = vmatpush1.msra.mxu0 0.0
    %1182 = vmatprep.subr.mxu0 0.0
    %1183 = vmatpush1.msra.mxu0 0.0
    %1184 = vmatprep.subr.mxu0 0.0
    %1185 = vmatpush1.msra.mxu0 0.0
    %1186 = vmatprep.mubr.f32.mxu0 0.0
    %1187 = vmatmul.mubr.f32.gmra.mrb[0].mxu0 %v1075
    %v1188 = vpop.f32.mrb[0].mxu0
    %v1189 = vadd.f32 0.0, %v1188
    %v1190 = vpop.f32.mrb[0].mxu0
    %1191 = vmatprep.mubr.f32.mxu0 0.0
    %1192 = vmatmul.mubr.f32.gmra.mrb[0].mxu0 %v1078
    %v1193 = vpop.f32.mrb[0].mxu0
    %v1194 = vadd.f32 0.0, %v1193
    %v1195 = vpop.f32.mrb[0].mxu0
    %1196 = vmatprep.mubr.f32.mxu0 0.0
    %1197 = vmatmul.mubr.f32.gmra.mrb[0].mxu0 %v1081
    %v1198 = vpop.f32.mrb[0].mxu0
    %v1199 = vadd.f32 0.0, %v1198
    %v1200 = vpop.f32.mrb[0].mxu0
    %1201 = vmatprep.mubr.f32.mxu0 0.0
    %1202 = vmatmul.mubr.f32.gmra.mrb[0].mxu0 %v1084
    %v1203 = vpop.f32.mrb[0].mxu0
    %v1204 = vadd.f32 0.0, %v1203
    %v1205 = vpop.f32.mrb[0].mxu0
    %1206 = vmatprep.mubr.f32.mxu0 0.0
    %1207 = vmatmul.mubr.f32.gmra.mrb[0].mxu0 %v1087
    %v1208 = vpop.f32.mrb[0].mxu0
    %v1209 = vadd.f32 0.0, %v1208
    %v1210 = vpop.f32.mrb[0].mxu0
    %1211 = vmatprep.mubr.f32.mxu0 0.0
    %1212 = vmatmul.mubr.f32.gmra.mrb[0].mxu0 %v1090
    %v1213 = vpop.f32.mrb[0].mxu0
    %v1214 = vadd.f32 0.0, %v1213
    %v1215 = vpop.f32.mrb[0].mxu0
    %1216 = vmatprep.mubr.f32.mxu0 0.0
    %1217 = vmatmul.mubr.f32.gmra.mrb[0].mxu0 %v1093
    %v1218 = vpop.f32.mrb[0].mxu0
    %v1219 = vadd.f32 0.0, %v1218
    %v1220 = vpop.f32.mrb[0].mxu0
    %1221 = vmatprep.mubr.f32.mxu0 0.0
    %1222 = vmatmul.mubr.f32.gmra.mrb[0].mxu0 %v1096
    %v1223 = vpop.f32.mrb[0].mxu0
    %v1224 = vadd.f32 0.0, %v1223
    %v1225 = vpop.f32.mrb[0].mxu0
    %1226 = vmatprep.mubr.f32.mxu0 0.0
    %1227 = vmatmul.mubr.f32.gmra.mrb[0].mxu0 %v1099
    %v1228 = vpop.f32.mrb[0].mxu0
    %v1229 = vadd.f32 0.0, %v1228
    %v1230 = vpop.f32.mrb[0].mxu0
    %1231 = vmatprep.mubr.f32.mxu0 0.0
    %1232 = vmatmul.mubr.f32.gmra.mrb[0].mxu0 %v1102
    %v1233 = vpop.f32.mrb[0].mxu0
    %v1234 = vadd.f32 0.0, %v1233
    %v1235 = vpop.f32.mrb[0].mxu0
    %1236 = vmatprep.mubr.f32.mxu0 0.0
    %1237 = vmatmul.mubr.f32.gmra.mrb[0].mxu0 %v1105
    %v1238 = vpop.f32.mrb[0].mxu0
    %v1239 = vadd.f32 0.0, %v1238
    %v1240 = vpop.f32.mrb[0].mxu0
    %1241 = vmatprep.mubr.f32.mxu0 0.0
    %1242 = vmatmul.mubr.f32.gmra.mrb[0].mxu0 %v1108
    %v1243 = vpop.f32.mrb[0].mxu0
    %v1244 = vadd.f32 0.0, %v1243
    %v1245 = vpop.f32.mrb[0].mxu0
    %1246 = vmatprep.mubr.f32.mxu0 0.0
    %1247 = vmatmul.mubr.f32.gmra.mrb[0].mxu0 %v1111
    %v1248 = vpop.f32.mrb[0].mxu0
    %v1249 = vadd.f32 0.0, %v1248
    %v1250 = vpop.f32.mrb[0].mxu0
    %1251 = vmatprep.mubr.f32.mxu0 0.0
    %1252 = vmatmul.mubr.f32.gmra.mrb[0].mxu0 %v1114
    %v1253 = vpop.f32.mrb[0].mxu0
    %v1254 = vadd.f32 0.0, %v1253
    %v1255 = vpop.f32.mrb[0].mxu0
    %1256 = vmatprep.mubr.f32.mxu0 0.0
    %1257 = vmatmul.mubr.f32.gmra.mrb[0].mxu0 %v1117
    %v1258 = vpop.f32.mrb[0].mxu0
    %v1259 = vadd.f32 0.0, %v1258
    %v1260 = vpop.f32.mrb[0].mxu0
    %1261 = vmatprep.mubr.f32.mxu0 0.0
    %1262 = vmatmul.mubr.f32.gmra.mrb[0].mxu0 %v1120
    %v1263 = vpop.f32.mrb[0].mxu0
    %v1264 = vadd.f32 0.0, %v1263
    %v1265 = vpop.f32.mrb[0].mxu0
    %1266 = vdwg.mxu0
    %v1268 = vrot.slane %v55, 1
    %v1271 = vsel %vm57, %v1189, 0
    %v1274 = vsel %vm57, %v1194, 0
    %v1277 = vsel %vm57, %v1199, 0
    %v1280 = vsel %vm57, %v1204, 0
    %v1283 = vsel %vm57, %v1209, 0
    %v1286 = vsel %vm57, %v1214, 0
    %v1289 = vsel %vm57, %v1219, 0
    %v1292 = vsel %vm57, %v1224, 0
    %v1295 = vsel %vm57, %v1229, 0
    %v1298 = vsel %vm57, %v1234, 0
    %v1301 = vsel %vm57, %v1239, 0
    %v1304 = vsel %vm57, %v1244, 0
    %v1307 = vsel %vm57, %v1249, 0
    %v1310 = vsel %vm57, %v1254, 0
    %v1313 = vsel %vm57, %v1259, 0
    %v1316 = vsel %vm57, %v1264, 0
    %1318 = vmatprep.subr.mxu0 0.0
    %1319 = vmatpush1.xpose.msra.mxu0 %v1271
    %1320 = vmatprep.subr.mxu0 0.0
    %1321 = vmatpush1.xpose.msra.mxu0 %v1274
    %1322 = vmatprep.subr.mxu0 0.0
    %1323 = vmatpush1.xpose.msra.mxu0 %v1277
    %1324 = vmatprep.subr.mxu0 0.0
    %1325 = vmatpush1.xpose.msra.mxu0 %v1280
    %1326 = vmatprep.subr.mxu0 0.0
    %1327 = vmatpush1.xpose.msra.mxu0 %v1283
    %1328 = vmatprep.subr.mxu0 0.0
    %1329 = vmatpush1.xpose.msra.mxu0 %v1286
    %1330 = vmatprep.subr.mxu0 0.0
    %1331 = vmatpush1.xpose.msra.mxu0 %v1289
    %1332 = vmatprep.subr.mxu0 0.0
    %1333 = vmatpush1.xpose.msra.mxu0 %v1292
    %1334 = vmatprep.subr.mxu0 0.0
    %1335 = vmatpush1.xpose.msra.mxu0 %v1295
    %1336 = vmatprep.subr.mxu0 0.0
    %1337 = vmatpush1.xpose.msra.mxu0 %v1298
    %1338 = vmatprep.subr.mxu0 0.0
    %1339 = vmatpush1.xpose.msra.mxu0 %v1301
    %1340 = vmatprep.subr.mxu0 0.0
    %1341 = vmatpush1.xpose.msra.mxu0 %v1304
    %1342 = vmatprep.subr.mxu0 0.0
    %1343 = vmatpush1.xpose.msra.mxu0 %v1307
    %1344 = vmatprep.subr.mxu0 0.0
    %1345 = vmatpush1.xpose.msra.mxu0 %v1310
    %1346 = vmatprep.subr.mxu0 0.0
    %1347 = vmatpush1.xpose.msra.mxu0 %v1313
    %1348 = vmatprep.subr.mxu0 0.0
    %1349 = vmatpush1.xpose.msra.mxu0 %v1316
    %1350 = vmatprep.subr.mxu0 0.0
    %1351 = vmatpush1.xpose.msra.mxu0 0.0
    %1352 = vmatprep.subr.mxu0 0.0
    %1353 = vmatpush1.xpose.msra.mxu0 0.0
    %1354 = vmatprep.subr.mxu0 0.0
    %1355 = vmatpush1.xpose.msra.mxu0 0.0
    %1356 = vmatprep.subr.mxu0 0.0
    %1357 = vmatpush1.xpose.msra.mxu0 0.0
    %1358 = vmatprep.subr.mxu0 0.0
    %1359 = vmatpush1.xpose.msra.mxu0 0.0
    %1360 = vmatprep.subr.mxu0 0.0
    %1361 = vmatpush1.xpose.msra.mxu0 0.0
    %1362 = vmatprep.subr.mxu0 0.0
    %1363 = vmatpush1.xpose.msra.mxu0 0.0
    %1364 = vmatprep.subr.mxu0 0.0
    %1365 = vmatpush1.xpose.msra.mxu0 0.0
    %1366 = vmatprep.subr.mxu0 0.0
    %1367 = vmatpush1.xpose.msra.mxu0 0.0
    %1368 = vmatprep.subr.mxu0 0.0
    %1369 = vmatpush1.xpose.msra.mxu0 0.0
    %1370 = vmatprep.subr.mxu0 0.0
    %1371 = vmatpush1.xpose.msra.mxu0 0.0
    %1372 = vmatprep.subr.mxu0 0.0
    %1373 = vmatpush1.xpose.msra.mxu0 0.0
    %1374 = vmatprep.subr.mxu0 0.0
    %1375 = vmatpush1.xpose.msra.mxu0 0.0
    %1376 = vmatprep.subr.mxu0 0.0
    %1377 = vmatpush1.xpose.msra.mxu0 0.0
    %1378 = vmatprep.subr.mxu0 0.0
    %1379 = vmatpush1.xpose.msra.mxu0 0.0
    %1380 = vmatprep.subr.mxu0 0.0
    %1381 = vmatpush1.xpose.msra.mxu0 0.0
    %1382 = vmatprep.mubr.f32.mxu0 0.0
    %1383 = vmatmul.mubr.f32.gmra.mrb[0].mxu0 %v625
    %v1384 = vpop.f32.mrb[0].mxu0
    %v1385 = vadd.f32 %v1268, %v1384
    %v1386 = vpop.f32.mrb[0].mxu0
    %1387 = vdwg.mxu0
    %v1388 = vadd.f32 %v1385, %v745
    %1389 = vst [vmem:[#allocation3 + $0x1] sm:$0x1] %v1388
    // Predicated region
    $region26: #{tpu_custom_call.1} parent=1 // pred_check
      _
    $region27: #{tpu_custom_call.1} parent=1 // pred_check_branch
      %1391 = sbr.rel (0) target = $region29
    $region28: #{tpu_custom_call.1} parent=1 // pred_region
      %s1393 = ssub.s32 32, 32
      %1394 = vsyncadd [#allocation4], %s1393
      %s1396 = sshll.u32 [#allocation3], 4
      %s1397 = int_to_ptr.vmem [resolvable:$true] %s1396
      %1399 = dma.vmem_to_hbm [thread:$0]  %s1397, 32, %s6, [#allocation4]
    $region29: #{tpu_custom_call.1} parent=1 // pred_fallthru
      _
    // Predicated region
    $region30: #{tpu_custom_call.1} parent=1 // pred_check
      _
    $region31: #{tpu_custom_call.1} parent=1 // pred_check_branch
      %1401 = sbr.rel (0) target = $region33
    $region32: #{tpu_custom_call.1} parent=1 // pred_region
      %1402 = dma.done [#allocation4], 32
    $region33: #{tpu_custom_call.1} parent=1 // pred_fallthru
      _
    %1403 = vsyncpa [#allocation4], 1

</llo_original>
